<compile_context>
chip_gen: v5e
topology: v5e:2x2
jax: 0.10.0
libtpu: 0.0.40
codegen_flags: <defaults>
</compile_context>

<pallas_src>
import jax
import jax.numpy as jnp
import numpy as np
from jax.experimental import pallas as pl
from jax.experimental.pallas import tpu as pltpu


def _vq_kernel(x_ref, cb_ref, cbt_ref, esq_ref, idx_ref, xq_ref, err_ref):
    x = x_ref[0]                                   # (Cp, PT), native dtype
    e = cb_ref[...]                                # (S, Cp), native dtype
    e_t = cbt_ref[...]                             # (Cp, S), native dtype
    half_e_sq = esq_ref[...]                       # (S, 1)  f32 (precomputed)
    S = e.shape[0]

    # argmin-equivalent scores: 0.5*||e_s||^2 - <e_s, x_p>.  The ||x||^2 term
    # is constant over s and the positive 2x rescale does not change the
    # argmin, so the old `e_sq - 2*dot` VPU multiply is folded away.
    scores = half_e_sq - jnp.dot(e, x, preferred_element_type=jnp.float32)    # (S, PT) f32

    # First-occurrence argmin over the codebook axis; the masked iota is reused
    # to build the one-hot (exactly one 1 per column, even on exact ties).
    iota_s = jax.lax.broadcasted_iota(jnp.int32, scores.shape, 0)             # (S, PT)
    mins = jnp.min(scores, axis=0, keepdims=True)                             # (1, PT)
    masked_iota = jnp.where(scores <= mins, iota_s, S)                        # (S, PT)
    idx = jnp.min(masked_iota, axis=0, keepdims=True)                         # (1, PT) i32
    onehot = (masked_iota == idx).astype(e.dtype)                             # (S, PT) 0/1

    # Gather codebook rows via one-hot matmul (MXU) using the pre-transposed
    # codebook: x_q = E^T @ onehot, contracting (last, first) — no re-layout.
    xq = jnp.dot(e_t, onehot, preferred_element_type=jnp.float32)             # (Cp, PT) f32

    idx_ref[0] = idx
    xq_ref[0] = xq.astype(xq_ref.dtype)

    # Lane-dense per-position squared error (summed over channels only); the
    # final scalar reduction happens in the JAX wrapper.  Padded channels are
    # zero in both x and xq, so they contribute nothing.
    d = x.astype(jnp.float32) - xq
    err_ref[0] = jnp.sum(d * d, axis=0, keepdims=True)                        # (1, PT) f32


def _round_up(v, m):
    return ((v + m - 1) // m) * m


def _tpu_vmem_bytes():
    try:
        cap = getattr(pltpu.get_tpu_info(), "vmem_capacity_bytes", None)
        if cap:
            return int(cap)
    except Exception:
        pass
    return 64 * 1024 * 1024  # conservative fallback (v7x per-TC VMEM)


def _plan_tiling(P, S):
    """Pick (p_tile, vmem_limit_bytes), generation-aware."""
    vmem_cap = _tpu_vmem_bytes()
    if vmem_cap >= (96 << 20):            # v5e / v6e: 128 MiB physical VMEM
        budget_elems = 3 * (512 * 1024)   # ~1.5M f32 elems of (S, P_TILE) temps (~36 MiB)
        cap, vmem_limit = 4096, 96 << 20
    else:                                 # v7x: 64 MiB per TensorCore
        budget_elems = 512 * 1024         # ~12 MiB of (S, P_TILE) temps
        cap, vmem_limit = 2048, 44 << 20
    # Multiples of 256 so the MXU N-dim is full width on v6e/v7x (2x256x256).
    by_vmem = max(256, (budget_elems // max(S, 1)) // 256 * 256)
    p_tile = min(by_vmem, cap, _round_up(P, 256))
    return p_tile, vmem_limit


@jax.jit
def vq_vae_codebook_forward(x, codebook):
    """Forward pass of VQ_VAE_codebook_loss (training / research_mode semantics)."""
    N, C = x.shape[0], x.shape[1]
    spatial = x.shape[2:]
    P = int(np.prod(spatial)) if spatial else 1
    S = codebook.shape[0]

    p_tile, vmem_limit = _plan_tiling(P, S)
    C_pad = _round_up(C, 8)               # sublane-full (C, P_TILE) tiles
    P_pad = _round_up(P, p_tile)          # replaces the old untiled fallback
    num_p = P_pad // p_tile

    x_flat = x.reshape(N, C, P)
    if C_pad != C or P_pad != P:
        x_flat = jnp.pad(x_flat, ((0, 0), (0, C_pad - C), (0, P_pad - P)))
    cb = codebook if C_pad == C else jnp.pad(codebook, ((0, 0), (0, C_pad - C)))
    cb_t = jnp.transpose(cb)                                             # (C_pad, S)
    cb_f32 = cb.astype(jnp.float32)
    half_e_sq = 0.5 * jnp.sum(cb_f32 * cb_f32, axis=1, keepdims=True)    # (S, 1) f32

    idx, xq, err = pl.pallas_call(
        _vq_kernel,
        out_shape=(
            jax.ShapeDtypeStruct((N, 1, P_pad), jnp.int32),     # codebook indices
            jax.ShapeDtypeStruct((N, C_pad, P_pad), x.dtype),   # quantized x
            jax.ShapeDtypeStruct((N, 1, P_pad), jnp.float32),   # per-position sq. error
        ),
        grid_spec=pltpu.PrefetchScalarGridSpec(
            num_scalar_prefetch=0,
            grid=(N, num_p),
            in_specs=[
                pl.BlockSpec((1, C_pad, p_tile), lambda n, p: (n, 0, p)),
                # Block-invariant inputs (constant index_map): DMA'd only once.
                pl.BlockSpec((S, C_pad), lambda n, p: (0, 0)),
                pl.BlockSpec((C_pad, S), lambda n, p: (0, 0)),
                pl.BlockSpec((S, 1), lambda n, p: (0, 0)),
            ],
            out_specs=[
                pl.BlockSpec((1, 1, p_tile), lambda n, p: (n, 0, p)),
                pl.BlockSpec((1, C_pad, p_tile), lambda n, p: (n, 0, p)),
                pl.BlockSpec((1, 1, p_tile), lambda n, p: (n, 0, p)),
            ],
        ),
        compiler_params=pltpu.CompilerParams(
            dimension_semantics=("parallel", "parallel"),
            vmem_limit_bytes=vmem_limit,
        ),
    )(x_flat, cb, cb_t, half_e_sq)

    idx = idx[:, :, :P]
    err = err[:, :, :P]
    x_quantized = xq[:, :C, :P].reshape(x.shape)
    # Padded columns sliced away, padded channels contribute 0; denominator is
    # the original element count, matching F.mse_loss.
    mse = jnp.sum(err) / jnp.float32(x.size)

    out = {}
    # Both losses have identical forward values (detach only affects gradients).
    out["loss_codebook"] = mse                                   # mse(x.detach(), x_q)
    out["loss_commitment"] = mse                                 # mse(x, x_q.detach())
    out["codebook_indices"] = idx.reshape((-1,) + spatial)       # [N, *spatial]
    # Straight-through estimator: value == x_q, gradient flows to x.
    out["output"] = x + jax.lax.stop_gradient(x_quantized - x)
    return out


def _reference(x, codebook):
    """Pure-JAX reference mirroring the PyTorch module exactly."""
    N, C = x.shape[0], x.shape[1]
    x_flat = x.reshape(N, C, -1)                                          # [N C P]
    dist = jnp.sum((x_flat[:, None] - codebook[None, ..., None]) ** 2, axis=2)
    enc = jnp.argmin(dist, axis=1)                                        # [N P]
    x_q = jnp.transpose(codebook[enc], (0, 2, 1)).reshape(x.shape)        # N P C -> N C P
    mse = jnp.mean((x - x_q) ** 2)
    return {
        "loss_codebook": mse,
        "loss_commitment": mse,
        "codebook_indices": enc.reshape((-1,) + x.shape[2:]),
        "output": x_q,
    }


if __name__ == "__main__":
    key = jax.random.PRNGKey(0)
    k_x, k_cb = jax.random.split(key)

    N, C, H, W = 2, 4, 16, 16
    codebook_size = 8
    in_features = C

    x = jax.random.normal(k_x, (N, C, H, W), dtype=jnp.float32)
    # nn.Parameter(torch.randn(codebook_size, in_features) / in_features)
    codebook = jax.random.normal(k_cb, (codebook_size, in_features),
                                 dtype=jnp.float32) / in_features

    out = vq_vae_codebook_forward(x, codebook)
    jax.block_until_ready(out)

    ref = _reference(x, codebook)
    np.testing.assert_array_equal(np.asarray(out["codebook_indices"]),
                                  np.asarray(ref["codebook_indices"]))
    np.testing.assert_allclose(np.asarray(out["output"]),
                               np.asarray(ref["output"]), rtol=1e-5, atol=1e-5)
    np.testing.assert_allclose(float(out["loss_codebook"]),
                               float(ref["loss_codebook"]), rtol=1e-5, atol=1e-6)
    np.testing.assert_allclose(float(out["loss_commitment"]),
                               float(ref["loss_commitment"]), rtol=1e-5, atol=1e-6)

    print("KERNEL_OK")
</pallas_src>

<mosaic_0001>
module attributes {stable_mosaic.version = 11 : i64} {
  func.func @_vq_kernel(%arg0: i32, %arg1: i32, %arg2: memref<1x8x256xf32, #tpu.memory_space<vmem>>, %arg3: memref<8x8xf32, #tpu.memory_space<vmem>>, %arg4: memref<8x8xf32, #tpu.memory_space<vmem>>, %arg5: memref<8x1xf32, #tpu.memory_space<vmem>>, %arg6: memref<1x1x256xi32, #tpu.memory_space<vmem>>, %arg7: memref<1x8x256xf32, #tpu.memory_space<vmem>>, %arg8: memref<1x1x256xf32, #tpu.memory_space<vmem>>) attributes {dimension_semantics = [#tpu.dimension_semantics<parallel>, #tpu.dimension_semantics<parallel>], iteration_bounds = array<i64: 2, 1>, scalar_prefetch = 0 : i64, scratch_operands = 0 : i64, tpu.core_type = #tpu.core_type<tc>, window_params = [{transform_indices = @transform_0, window_bounds = array<i64: 1, 8, 256>}, {pipeline_mode = #tpu.pipeline_mode<synchronous>, transform_indices = @transform_1, window_bounds = array<i64: 8, 8>}, {pipeline_mode = #tpu.pipeline_mode<synchronous>, transform_indices = @transform_2, window_bounds = array<i64: 8, 8>}, {pipeline_mode = #tpu.pipeline_mode<synchronous>, transform_indices = @transform_3, window_bounds = array<i64: 8, 1>}, {transform_indices = @transform_4, window_bounds = array<i64: 1, 1, 256>}, {transform_indices = @transform_5, window_bounds = array<i64: 1, 8, 256>}, {transform_indices = @transform_6, window_bounds = array<i64: 1, 1, 256>}]} {
    %c0 = arith.constant 0 : index
    %c0_0 = arith.constant 0 : index
    %c0_1 = arith.constant 0 : index
    %0 = vector.load %arg2[%c0, %c0_0, %c0_1] : memref<1x8x256xf32, #tpu.memory_space<vmem>>, vector<1x8x256xf32>
    %1 = vector.shape_cast %0 : vector<1x8x256xf32> to vector<8x256xf32>
    %c0_2 = arith.constant 0 : index
    %c0_3 = arith.constant 0 : index
    %2 = vector.load %arg3[%c0_2, %c0_3] : memref<8x8xf32, #tpu.memory_space<vmem>>, vector<8x8xf32>
    %c0_4 = arith.constant 0 : index
    %c0_5 = arith.constant 0 : index
    %3 = vector.load %arg4[%c0_4, %c0_5] : memref<8x8xf32, #tpu.memory_space<vmem>>, vector<8x8xf32>
    %c0_6 = arith.constant 0 : index
    %c0_7 = arith.constant 0 : index
    %4 = vector.load %arg5[%c0_6, %c0_7] : memref<8x1xf32, #tpu.memory_space<vmem>>, vector<8x1xf32>
    %cst = arith.constant dense<0.000000e+00> : vector<8x256xf32>
    %5 = tpu.matmul %2, %1, %cst {dimension_numbers = #tpu.dot_dimension_numbers<[1], [0], [0], [1], [0, 0, 1, 1], [], []>} : vector<8x8xf32>, vector<8x256xf32>, vector<8x256xf32> -> vector<8x256xf32>
    %6 = vector.broadcast %4 : vector<8x1xf32> to vector<8x256xf32>
    %7 = arith.subf %6, %5 : vector<8x256xf32>
    %8 = tpu.iota {dimensions = array<i32: 0>} : vector<8x256xi32>
    %cst_8 = arith.constant dense<0x7F800000> : vector<256xf32>
    %9 = vector.multi_reduction <minimumf>, %7, %cst_8 [0] : vector<8x256xf32> to vector<256xf32>
    %10 = vector.shape_cast %9 : vector<256xf32> to vector<1x256xf32>
    %11 = vector.broadcast %10 : vector<1x256xf32> to vector<8x256xf32>
    %12 = arith.cmpf ole, %7, %11 : vector<8x256xf32>
    %c8_i32 = arith.constant 8 : i32
    %13 = vector.broadcast %c8_i32 : i32 to vector<8x256xi32>
    %14 = arith.select %12, %8, %13 : vector<8x256xi1>, vector<8x256xi32>
    %cst_9 = arith.constant dense<2147483647> : vector<256xi32>
    %15 = vector.multi_reduction <minsi>, %14, %cst_9 [0] : vector<8x256xi32> to vector<256xi32>
    %16 = vector.shape_cast %15 : vector<256xi32> to vector<1x256xi32>
    %17 = vector.broadcast %16 : vector<1x256xi32> to vector<8x256xi32>
    %18 = arith.cmpi eq, %14, %17 : vector<8x256xi32>
    %19 = arith.extui %18 : vector<8x256xi1> to vector<8x256xi32>
    %20 = arith.sitofp %19 : vector<8x256xi32> to vector<8x256xf32>
    %cst_10 = arith.constant dense<0.000000e+00> : vector<8x256xf32>
    %21 = tpu.matmul %3, %20, %cst_10 {dimension_numbers = #tpu.dot_dimension_numbers<[1], [0], [0], [1], [0, 0, 1, 1], [], []>} : vector<8x8xf32>, vector<8x256xf32>, vector<8x256xf32> -> vector<8x256xf32>
    %c0_11 = arith.constant 0 : index
    %c0_12 = arith.constant 0 : index
    %c0_13 = arith.constant 0 : index
    %22 = vector.load %arg6[%c0_11, %c0_12, %c0_13] : memref<1x1x256xi32, #tpu.memory_space<vmem>>, vector<1x1x256xi32>
    %23 = vector.shape_cast %22 : vector<1x1x256xi32> to vector<1x256xi32>
    %24 = vector.shape_cast %16 : vector<1x256xi32> to vector<1x1x256xi32>
    tpu.vector_store %arg6[%c0_11, %c0_12, %c0_13], %24 {strides = array<i32>} : memref<1x1x256xi32, #tpu.memory_space<vmem>>, vector<1x1x256xi32>,
    %c0_14 = arith.constant 0 : index
    %c0_15 = arith.constant 0 : index
    %c0_16 = arith.constant 0 : index
    %25 = vector.load %arg7[%c0_14, %c0_15, %c0_16] : memref<1x8x256xf32, #tpu.memory_space<vmem>>, vector<1x8x256xf32>
    %26 = vector.shape_cast %25 : vector<1x8x256xf32> to vector<8x256xf32>
    %27 = vector.shape_cast %21 : vector<8x256xf32> to vector<1x8x256xf32>
    tpu.vector_store %arg7[%c0_14, %c0_15, %c0_16], %27 {strides = array<i32>} : memref<1x8x256xf32, #tpu.memory_space<vmem>>, vector<1x8x256xf32>,
    %28 = arith.subf %1, %21 : vector<8x256xf32>
    %29 = arith.mulf %28, %28 : vector<8x256xf32>
    %cst_17 = arith.constant dense<0.000000e+00> : vector<256xf32>
    %30 = vector.multi_reduction <add>, %29, %cst_17 [0] : vector<8x256xf32> to vector<256xf32>
    %31 = vector.shape_cast %30 : vector<256xf32> to vector<1x256xf32>
    %c0_18 = arith.constant 0 : index
    %c0_19 = arith.constant 0 : index
    %c0_20 = arith.constant 0 : index
    %32 = vector.load %arg8[%c0_18, %c0_19, %c0_20] : memref<1x1x256xf32, #tpu.memory_space<vmem>>, vector<1x1x256xf32>
    %33 = vector.shape_cast %32 : vector<1x1x256xf32> to vector<1x256xf32>
    %34 = vector.shape_cast %31 : vector<1x256xf32> to vector<1x1x256xf32>
    tpu.vector_store %arg8[%c0_18, %c0_19, %c0_20], %34 {strides = array<i32>} : memref<1x1x256xf32, #tpu.memory_space<vmem>>, vector<1x1x256xf32>,
    return
  }
  func.func @transform_0(%arg0: i32, %arg1: i32) -> (i32, i32, i32) {
    %c0_i32 = arith.constant 0 : i32
    %c0_i32_0 = arith.constant 0 : i32
    return %arg0, %c0_i32, %arg1 : i32, i32, i32
  }
  func.func @transform_1(%arg0: i32, %arg1: i32) -> (i32, i32) {
    %c0_i32 = arith.constant 0 : i32
    %c0_i32_0 = arith.constant 0 : i32
    %c0_i32_1 = arith.constant 0 : i32
    return %c0_i32, %c0_i32_0 : i32, i32
  }
  func.func @transform_2(%arg0: i32, %arg1: i32) -> (i32, i32) {
    %c0_i32 = arith.constant 0 : i32
    %c0_i32_0 = arith.constant 0 : i32
    %c0_i32_1 = arith.constant 0 : i32
    return %c0_i32, %c0_i32_0 : i32, i32
  }
  func.func @transform_3(%arg0: i32, %arg1: i32) -> (i32, i32) {
    %c0_i32 = arith.constant 0 : i32
    %c0_i32_0 = arith.constant 0 : i32
    %c0_i32_1 = arith.constant 0 : i32
    return %c0_i32, %c0_i32_0 : i32, i32
  }
  func.func @transform_4(%arg0: i32, %arg1: i32) -> (i32, i32, i32) {
    %c0_i32 = arith.constant 0 : i32
    %c0_i32_0 = arith.constant 0 : i32
    return %arg0, %c0_i32, %arg1 : i32, i32, i32
  }
  func.func @transform_5(%arg0: i32, %arg1: i32) -> (i32, i32, i32) {
    %c0_i32 = arith.constant 0 : i32
    %c0_i32_0 = arith.constant 0 : i32
    return %arg0, %c0_i32, %arg1 : i32, i32, i32
  }
  func.func @transform_6(%arg0: i32, %arg1: i32) -> (i32, i32, i32) {
    %c0_i32 = arith.constant 0 : i32
    %c0_i32_0 = arith.constant 0 : i32
    return %arg0, %c0_i32, %arg1 : i32, i32, i32
  }
}

</mosaic_0001>

<llo_original>
// kernel: vq_vae_codebook_forward.1
$region0: #{vq_vae_codebook_forward.1}
  #allocation0 [shape = 'u32[]', space=smem, size = 0x4, offset = 0x4, fixed_abs, tag = 'smem constant byte address 0x4 - core index']
  #allocation1 [shape = 'u32[72,128]{1,0:T(1,128)}', space=vmem, size = 0x9000, scoped, tag = 'internal scratch']
  %s0 = inlined_call_operand.vmem [shape: f32[2,8,256], index: 0, kind: input, shape index: {}]
  %s1 = inlined_call_operand.vmem [shape: f32[8,8], index: 1, kind: input, shape index: {}]
  %s2 = inlined_call_operand.vmem [shape: f32[8,8], index: 2, kind: input, shape index: {}]
  %s3 = inlined_call_operand.vmem [shape: f32[8,1], index: 3, kind: input, shape index: {}]
  %s4 = inlined_call_operand.vmem [shape: s32[2,1,256], index: 4, kind: output, shape index: {0}]
  %s5 = inlined_call_operand.vmem [shape: f32[2,8,256], index: 5, kind: output, shape index: {1}]
  %s6 = inlined_call_operand.vmem [shape: f32[2,1,256], index: 6, kind: output, shape index: {2}]
  %7 = xla_tuple %s4, %s5, %s6
  %s8 = sld [smem:[#allocation0]]
  $region65: #{vq_vae_codebook_forward.1} parent=0
    _
  %s10 = ssub.s32 1, %s8
  %s11 = scalar_select 0, %s10, %s8
  loop: start=0, step=1, limit=4
  $region2: #{vq_vae_codebook_forward.1} parent=0 // loop_pre_header
    _
  $region3: #{vq_vae_codebook_forward.1} parent=0 // loop_header
    %s13 = sphi 0, %s17
    %p14 = scmp.ge.s32.totalorder %s13, 4
    %s20 = sphi 0, %s32
    %s21 = sphi 0, %s28
    %s22 = sphi 0, %s20
    %s23 = sphi 0, %s21
    %s24 = sphi 0, %s22
    %s25 = sphi 0, %s23
    %s37 = sphi 0, %s39
    %s40 = sphi 0, %s37
    %s41 = sphi 0, %s40
    %s57 = sphi 0, %s41
    %s61 = sphi 0, %s61
    %s63 = sphi 0, %s61
    %s64 = sphi 0, %s63
    %s78 = sphi 0, %s64
    %s82 = sphi 0, %s82
    %s84 = sphi 0, %s82
    %s85 = sphi 0, %s84
    %s99 = sphi 0, %s85
    %s103 = sphi 0, %s103
    %s105 = sphi 0, %s103
    %s106 = sphi 0, %s105
    %s120 = sphi 0, %s106
    %s128 = sphi 0, %s130
    %s131 = sphi 0, %s128
    %s132 = sphi 0, %s131
    %s148 = sphi 0, %s132
    %s156 = sphi 0, %s158
    %s159 = sphi 0, %s156
    %s160 = sphi 0, %s159
    %s176 = sphi 0, %s160
    %s184 = sphi 0, %s186
    %s187 = sphi 0, %s184
    %s188 = sphi 0, %s187
    %s204 = sphi 0, %s188
  $region4: #{vq_vae_codebook_forward.1} parent=0 // loop_header_branch
    %16 = sbr.rel (%p14) target = $region8
  $region5: #{vq_vae_codebook_forward.1} parent=0 // loop_body
    %s18 = ssub.s32 %s13, 1
    %s19 = ssub.s32 %s13, 2
    %s26 = sadd.s32 1, %s21
    %p27 = scmp.ge.s32.totalorder %s26, 1
    %s28 = scalar_select %p27, 0, %s26
    %s29 = sadd.s32 1, %s20
    %s30 = scalar_select %p27, %s29, %s20
    %p31 = scmp.ge.s32.totalorder %s30, 2
    %s32 = scalar_select %p31, 0, %s30
    %s33 = ssub.s32 %s20, %s32
    %s34 = ssub.s32 %s21, %s28
    %s35 = sor.u32 %s33, %s34
    %p36 = scmp.eq.s32.totalorder %s35, 0
    %s38 = sadd.s32 %s37, 1
    %s39 = scalar_select %p36, %s37, %s38
    %p42 = pneg %p36
    %p43 = scmp.eq.s32.totalorder %s13, 1
    %p44 = por %p42, %p43
    %p45 = scmp.ne.s32.totalorder %s37, %s40
    %p46 = scmp.eq.s32.totalorder %s13, 0
    %p47 = por %p45, %p46
    %p48 = scmp.ne.s32.totalorder %s37, %s40
    %p49 = scmp.eq.s32.totalorder %s18, 1
    %p50 = por %p48, %p49
    %p51 = scmp.ne.s32.totalorder %s40, %s41
    %p52 = scmp.eq.s32.totalorder %s18, 0
    %p53 = por %p51, %p52
    %p54 = scmp.ne.s32.totalorder %s40, %s41
    %p55 = scmp.eq.s32.totalorder %s19, 1
    %p56 = por %p54, %p55
    %p58 = scmp.ne.s32.totalorder %s41, %s57
    %p59 = scmp.eq.s32.totalorder %s19, 0
    %p60 = por %p58, %p59
    %s62 = sadd.s32 %s61, 1
    %p65 = scmp.eq.s32.totalorder %s13, 1
    %p66 = scmp.ne.s32.totalorder %s61, %s63
    %p67 = scmp.eq.s32.totalorder %s13, 0
    %p68 = por %p66, %p67
    %p69 = scmp.ne.s32.totalorder %s61, %s63
    %p70 = scmp.eq.s32.totalorder %s18, 1
    %p71 = por %p69, %p70
    %p72 = scmp.ne.s32.totalorder %s63, %s64
    %p73 = scmp.eq.s32.totalorder %s18, 0
    %p74 = por %p72, %p73
    %p75 = scmp.ne.s32.totalorder %s63, %s64
    %p76 = scmp.eq.s32.totalorder %s19, 1
    %p77 = por %p75, %p76
    %p79 = scmp.ne.s32.totalorder %s64, %s78
    %p80 = scmp.eq.s32.totalorder %s19, 0
    %p81 = por %p79, %p80
    %s83 = sadd.s32 %s82, 1
    %p86 = scmp.eq.s32.totalorder %s13, 1
    %p87 = scmp.ne.s32.totalorder %s82, %s84
    %p88 = scmp.eq.s32.totalorder %s13, 0
    %p89 = por %p87, %p88
    %p90 = scmp.ne.s32.totalorder %s82, %s84
    %p91 = scmp.eq.s32.totalorder %s18, 1
    %p92 = por %p90, %p91
    %p93 = scmp.ne.s32.totalorder %s84, %s85
    %p94 = scmp.eq.s32.totalorder %s18, 0
    %p95 = por %p93, %p94
    %p96 = scmp.ne.s32.totalorder %s84, %s85
    %p97 = scmp.eq.s32.totalorder %s19, 1
    %p98 = por %p96, %p97
    %p100 = scmp.ne.s32.totalorder %s85, %s99
    %p101 = scmp.eq.s32.totalorder %s19, 0
    %p102 = por %p100, %p101
    %s104 = sadd.s32 %s103, 1
    %p107 = scmp.eq.s32.totalorder %s13, 1
    %p108 = scmp.ne.s32.totalorder %s103, %s105
    %p109 = scmp.eq.s32.totalorder %s13, 0
    %p110 = por %p108, %p109
    %p111 = scmp.ne.s32.totalorder %s103, %s105
    %p112 = scmp.eq.s32.totalorder %s18, 1
    %p113 = por %p111, %p112
    %p114 = scmp.ne.s32.totalorder %s105, %s106
    %p115 = scmp.eq.s32.totalorder %s18, 0
    %p116 = por %p114, %p115
    %p117 = scmp.ne.s32.totalorder %s105, %s106
    %p118 = scmp.eq.s32.totalorder %s19, 1
    %p119 = por %p117, %p118
    %p121 = scmp.ne.s32.totalorder %s106, %s120
    %p122 = scmp.eq.s32.totalorder %s19, 0
    %p123 = por %p121, %p122
    %s124 = ssub.s32 %s20, %s32
    %s125 = ssub.s32 %s21, %s28
    %s126 = sor.u32 %s124, %s125
    %p127 = scmp.eq.s32.totalorder %s126, 0
    %s129 = sadd.s32 %s128, 1
    %s130 = scalar_select %p127, %s128, %s129
    %p133 = pneg %p127
    %p134 = scmp.eq.s32.totalorder %s13, 1
    %p135 = por %p133, %p134
    %p136 = scmp.ne.s32.totalorder %s128, %s131
    %p137 = scmp.eq.s32.totalorder %s13, 0
    %p138 = por %p136, %p137
    %p139 = scmp.ne.s32.totalorder %s128, %s131
    %p140 = scmp.eq.s32.totalorder %s18, 1
    %p141 = por %p139, %p140
    %p142 = scmp.ne.s32.totalorder %s131, %s132
    %p143 = scmp.eq.s32.totalorder %s18, 0
    %p144 = por %p142, %p143
    %p145 = scmp.ne.s32.totalorder %s131, %s132
    %p146 = scmp.eq.s32.totalorder %s19, 1
    %p147 = por %p145, %p146
    %p149 = scmp.ne.s32.totalorder %s132, %s148
    %p150 = scmp.eq.s32.totalorder %s19, 0
    %p151 = por %p149, %p150
    %s152 = ssub.s32 %s20, %s32
    %s153 = ssub.s32 %s21, %s28
    %s154 = sor.u32 %s152, %s153
    %p155 = scmp.eq.s32.totalorder %s154, 0
    %s157 = sadd.s32 %s156, 1
    %s158 = scalar_select %p155, %s156, %s157
    %p161 = pneg %p155
    %p162 = scmp.eq.s32.totalorder %s13, 1
    %p163 = por %p161, %p162
    %p164 = scmp.ne.s32.totalorder %s156, %s159
    %p165 = scmp.eq.s32.totalorder %s13, 0
    %p166 = por %p164, %p165
    %p167 = scmp.ne.s32.totalorder %s156, %s159
    %p168 = scmp.eq.s32.totalorder %s18, 1
    %p169 = por %p167, %p168
    %p170 = scmp.ne.s32.totalorder %s159, %s160
    %p171 = scmp.eq.s32.totalorder %s18, 0
    %p172 = por %p170, %p171
    %p173 = scmp.ne.s32.totalorder %s159, %s160
    %p174 = scmp.eq.s32.totalorder %s19, 1
    %p175 = por %p173, %p174
    %p177 = scmp.ne.s32.totalorder %s160, %s176
    %p178 = scmp.eq.s32.totalorder %s19, 0
    %p179 = por %p177, %p178
    %s180 = ssub.s32 %s20, %s32
    %s181 = ssub.s32 %s21, %s28
    %s182 = sor.u32 %s180, %s181
    %p183 = scmp.eq.s32.totalorder %s182, 0
    %s185 = sadd.s32 %s184, 1
    %s186 = scalar_select %p183, %s184, %s185
    %p189 = pneg %p183
    %p190 = scmp.eq.s32.totalorder %s13, 1
    %p191 = por %p189, %p190
    %p192 = scmp.ne.s32.totalorder %s184, %s187
    %p193 = scmp.eq.s32.totalorder %s13, 0
    %p194 = por %p192, %p193
    %p195 = scmp.ne.s32.totalorder %s184, %s187
    %p196 = scmp.eq.s32.totalorder %s18, 1
    %p197 = por %p195, %p196
    %p198 = scmp.ne.s32.totalorder %s187, %s188
    %p199 = scmp.eq.s32.totalorder %s18, 0
    %p200 = por %p198, %p199
    %p201 = scmp.ne.s32.totalorder %s187, %s188
    %p202 = scmp.eq.s32.totalorder %s19, 1
    %p203 = por %p201, %p202
    %p205 = scmp.ne.s32.totalorder %s188, %s204
    %p206 = scmp.eq.s32.totalorder %s19, 0
    %p207 = por %p205, %p206
    %p208 = scmp.le.s32.totalorder 1, %s13
    %p209 = scmp.lt.s32.totalorder %s13, 3
    %p210 = pnand %p208, %p209
    %p211 = pneg %p210
    // Predicated region
    $region9: #{vq_vae_codebook_forward.1} parent=5 // pred_check
      _
    $region10: #{vq_vae_codebook_forward.1} parent=5 // pred_check_branch
      %213 = sbr.rel (%p210) target = $region12
    $region11: #{vq_vae_codebook_forward.1} parent=5 // pred_region
      %s214 = ssub.s32 %s13, 1
      // Predicated region
      $region13: #{vq_vae_codebook_forward.1} parent=11 // pred_check
        %p215 = pneg %p74
      $region14: #{vq_vae_codebook_forward.1} parent=11 // pred_check_branch
        %217 = sbr.rel (%p215) target = $region16
      $region15: #{vq_vae_codebook_forward.1} parent=11 // pred_region
        _
      $region16: #{vq_vae_codebook_forward.1} parent=11 // pred_fallthru
        _
      // Predicated region
      $region17: #{vq_vae_codebook_forward.1} parent=11 // pred_check
        %p218 = pneg %p95
      $region18: #{vq_vae_codebook_forward.1} parent=11 // pred_check_branch
        %220 = sbr.rel (%p218) target = $region20
      $region19: #{vq_vae_codebook_forward.1} parent=11 // pred_region
        _
      $region20: #{vq_vae_codebook_forward.1} parent=11 // pred_fallthru
        _
      // Predicated region
      $region21: #{vq_vae_codebook_forward.1} parent=11 // pred_check
        %p221 = pneg %p116
      $region22: #{vq_vae_codebook_forward.1} parent=11 // pred_check_branch
        %223 = sbr.rel (%p221) target = $region24
      $region23: #{vq_vae_codebook_forward.1} parent=11 // pred_region
        _
      $region24: #{vq_vae_codebook_forward.1} parent=11 // pred_fallthru
        _
    $region12: #{vq_vae_codebook_forward.1} parent=5 // pred_fallthru
      _
    %p224 = scmp.lt.s32.totalorder %s13, 2
    // Predicated region
    $region25: #{vq_vae_codebook_forward.1} parent=5 // pred_check
      %p225 = pneg %p224
    $region26: #{vq_vae_codebook_forward.1} parent=5 // pred_check_branch
      %227 = sbr.rel (%p225) target = $region28
    $region27: #{vq_vae_codebook_forward.1} parent=5 // pred_region
      // Predicated region
      $region29: #{vq_vae_codebook_forward.1} parent=27 // pred_check
        %p228 = pneg %p47
      $region30: #{vq_vae_codebook_forward.1} parent=27 // pred_check_branch
        %230 = sbr.rel (%p228) target = $region32
      $region31: #{vq_vae_codebook_forward.1} parent=27 // pred_region
        %s231 = smul.u32 2, %s21
        %p232 = scmp.lt.s32.totalorder %s20, 1
        %s233 = scalar_select %p232, %s20, 1
        %p234 = scmp.lt.s32.totalorder %s231, 1
        %s235 = scalar_select %p234, %s231, 1
        %s236 = smul.addr %s233, 2
        %s237 = sadd.s32 %s235, %s236
        %s238 = smul.addr %s237, 8
        %s239 = scalar_lea.vmem %s0, %s238
        %s240 = smul.u32 2, %s21
      $region32: #{vq_vae_codebook_forward.1} parent=27 // pred_fallthru
        _
    $region28: #{vq_vae_codebook_forward.1} parent=5 // pred_fallthru
      _
    %p241 = scmp.le.s32.totalorder 1, %s13
    %p242 = scmp.lt.s32.totalorder %s13, 3
    %p243 = pnand %p241, %p242
    %p244 = pneg %p243
    // Predicated region
    $region33: #{vq_vae_codebook_forward.1} parent=5 // pred_check
      _
    $region34: #{vq_vae_codebook_forward.1} parent=5 // pred_check_branch
      %246 = sbr.rel (%p243) target = $region36
    $region35: #{vq_vae_codebook_forward.1} parent=5 // pred_region
      %s247 = ssub.s32 %s13, 1
      %s248 = smul.u32 2, %s23
      %p249 = scmp.lt.s32.totalorder %s22, 1
      %s250 = scalar_select %p249, %s22, 1
      %p251 = scmp.lt.s32.totalorder %s248, 1
      %s252 = scalar_select %p251, %s248, 1
      %s253 = smul.addr %s250, 2
      %s254 = sadd.s32 %s252, %s253
      %s255 = smul.addr %s254, 8
      %s256 = scalar_lea.vmem %s0, %s255
      %p257 = pneg %p53
      %p258 = pneg %p50
      %p259 = pneg %p74
      %p260 = pneg %p71
      %p261 = pneg %p95
      %p262 = pneg %p92
      %p263 = pneg %p116
      %p264 = pneg %p113
      %p265 = pneg %p144
      %p266 = pneg %p141
      %s267 = smul.u32 2, %s23
      %p268 = scmp.lt.s32.totalorder %s22, 1
      %s269 = scalar_select %p268, %s22, 1
      %p270 = scmp.lt.s32.totalorder %s267, 1
      %s271 = scalar_select %p270, %s267, 1
      %s272 = smul.addr %s269, 2
      %s273 = sadd.s32 %s271, %s272
      %s274 = scalar_lea.vmem %s4, %s273
      %p275 = pneg %p172
      %p276 = pneg %p169
      %s277 = smul.u32 2, %s23
      %p278 = scmp.lt.s32.totalorder %s22, 1
      %s279 = scalar_select %p278, %s22, 1
      %p280 = scmp.lt.s32.totalorder %s277, 1
      %s281 = scalar_select %p280, %s277, 1
      %s282 = smul.addr %s279, 2
      %s283 = sadd.s32 %s281, %s282
      %s284 = smul.addr %s283, 8
      %s285 = scalar_lea.vmem %s5, %s284
      %p286 = pneg %p200
      %p287 = pneg %p197
      %s288 = smul.u32 2, %s23
      %p289 = scmp.lt.s32.totalorder %s22, 1
      %s290 = scalar_select %p289, %s22, 1
      %p291 = scmp.lt.s32.totalorder %s288, 1
      %s292 = scalar_select %p291, %s288, 1
      %s293 = smul.addr %s290, 2
      %s294 = sadd.s32 %s292, %s293
      %s295 = scalar_lea.vmem %s6, %s294
      %s296 = smul.u32 2, %s23
      %p297 = scmp.lt.s32.totalorder %s22, 1
      %s298 = scalar_select %p297, %s22, 1
      %p299 = scmp.lt.s32.totalorder %s296, 1
      %s300 = scalar_select %p299, %s296, 1
      %s301 = smul.addr %s298, 2
      %s302 = sadd.s32 %s300, %s301
      %s303 = smul.addr %s302, 8
      %s304 = scalar_lea.vmem %s0, %s303
      %s305 = smul.u32 2, %s23
      %s306 = smul.u32 2, %s23
      %p307 = scmp.lt.s32.totalorder %s22, 1
      %s308 = scalar_select %p307, %s22, 1
      %p309 = scmp.lt.s32.totalorder %s306, 1
      %s310 = scalar_select %p309, %s306, 1
      %s311 = smul.addr %s308, 2
      %s312 = sadd.s32 %s310, %s311
      %s313 = scalar_lea.vmem %s4, %s312
      %s314 = smul.u32 2, %s23
      %s315 = smul.u32 2, %s23
      %p316 = scmp.lt.s32.totalorder %s22, 1
      %s317 = scalar_select %p316, %s22, 1
      %p318 = scmp.lt.s32.totalorder %s315, 1
      %s319 = scalar_select %p318, %s315, 1
      %s320 = smul.addr %s317, 2
      %s321 = sadd.s32 %s319, %s320
      %s322 = smul.addr %s321, 8
      %s323 = scalar_lea.vmem %s5, %s322
      %s324 = smul.u32 2, %s23
      %s325 = smul.u32 2, %s23
      %p326 = scmp.lt.s32.totalorder %s22, 1
      %s327 = scalar_select %p326, %s22, 1
      %p328 = scmp.lt.s32.totalorder %s325, 1
      %s329 = scalar_select %p328, %s325, 1
      %s330 = smul.addr %s327, 2
      %s331 = sadd.s32 %s329, %s330
      %s332 = scalar_lea.vmem %s6, %s331
      %s333 = smul.u32 2, %s23
      %v334 = vld [vmem:[%s304] sm:$0xff]
      %v335 = vld [vmem:[%s304 + $0x8] sm:$0xff]
      %v336 = vld [vmem:[%s1] sm:$0xff]
      %v337 = vld [vmem:[%s2] sm:$0xff]
      %v338 = vld [vmem:[%s3] sm:$0xff]
      %vm339 = vcmask 64512
      %v341 = vsel %vm339, %v336, 0
      %343 = vmatpush.msra.mxu0 0.0
      %344 = vmatpush.msra.mxu0 0.0
      %345 = vmatpush.msra.mxu0 0.0
      %346 = vmatpush.msra.mxu0 0.0
      %347 = vmatpush.msra.mxu0 0.0
      %348 = vmatpush.msra.mxu0 0.0
      %349 = vmatpush.msra.mxu0 0.0
      %350 = vmatpush.msra.mxu0 0.0
      %351 = vmatpush.msra.mxu0 0.0
      %352 = vmatpush.msra.mxu0 0.0
      %353 = vmatpush.msra.mxu0 0.0
      %354 = vmatpush.msra.mxu0 0.0
      %355 = vmatpush.msra.mxu0 0.0
      %356 = vmatpush.msra.mxu0 0.0
      %357 = vmatpush.msra.mxu0 0.0
      %358 = vmatpush.msra.mxu0 %v334
      %359 = vmatmul.f32.gmra.mxu0 %v341
      %v360 = vpop.f32.mrf.mxu0
      %v361 = vadd.f32 0.0, %v360
      %362 = vdwg.mxu0
      %363 = vmatpush.msra.mxu0 0.0
      %364 = vmatpush.msra.mxu0 0.0
      %365 = vmatpush.msra.mxu0 0.0
      %366 = vmatpush.msra.mxu0 0.0
      %367 = vmatpush.msra.mxu0 0.0
      %368 = vmatpush.msra.mxu0 0.0
      %369 = vmatpush.msra.mxu0 0.0
      %370 = vmatpush.msra.mxu0 0.0
      %371 = vmatpush.msra.mxu0 0.0
      %372 = vmatpush.msra.mxu0 0.0
      %373 = vmatpush.msra.mxu0 0.0
      %374 = vmatpush.msra.mxu0 0.0
      %375 = vmatpush.msra.mxu0 0.0
      %376 = vmatpush.msra.mxu0 0.0
      %377 = vmatpush.msra.mxu0 0.0
      %378 = vmatpush.msra.mxu0 %v335
      %379 = vmatmul.f32.gmra.mxu0 %v341
      %v380 = vpop.f32.mrf.mxu0
      %v381 = vadd.f32 0.0, %v380
      %382 = vdwg.mxu0
      %384 = vset.pattern.permute.xlu0 0
      %385 = vperm.xlu0 %384, %v338
      %v386 = vpop.permute.xlu0 %385
      %v388 = vsub.f32 %v386, %v361
      %v389 = vsub.f32 %v386, %v381
      %v390 = vlaneseq
      %v391 = vshrl.u32 %v390, 7
      %v392 = vrot.slane %v388, 4
      %v393 = vmin.f32 %v388, %v392
      %v394 = vrot.slane %v393, 2
      %v395 = vmin.f32 %v393, %v394
      %v396 = vrot.slane %v395, 1
      %v397 = vmin.f32 %v395, %v396
      %v398 = vrot.slane %v389, 4
      %v399 = vmin.f32 %v389, %v398
      %v400 = vrot.slane %v399, 2
      %v401 = vmin.f32 %v399, %v400
      %v402 = vrot.slane %v401, 1
      %v403 = vmin.f32 %v401, %v402
      %vm404 = vcmp.le.f32.partialorder %v388, %v397
      %vm405 = vcmp.le.f32.partialorder %v389, %v403
      %v406 = vsel %vm404, %v391, 8
      %v407 = vsel %vm405, %v391, 8
      %v408 = vrot.slane %v406, 4
      %vm409 = vcmp.lt.s32.totalorder %v406, %v408
      %v410 = vsel %vm409, %v406, %v408
      %v411 = vrot.slane %v410, 2
      %vm412 = vcmp.lt.s32.totalorder %v410, %v411
      %v413 = vsel %vm412, %v410, %v411
      %v414 = vrot.slane %v413, 1
      %vm415 = vcmp.lt.s32.totalorder %v413, %v414
      %v416 = vsel %vm415, %v413, %v414
      %v417 = vrot.slane %v407, 4
      %vm418 = vcmp.lt.s32.totalorder %v407, %v417
      %v419 = vsel %vm418, %v407, %v417
      %v420 = vrot.slane %v419, 2
      %vm421 = vcmp.lt.s32.totalorder %v419, %v420
      %v422 = vsel %vm421, %v419, %v420
      %v423 = vrot.slane %v422, 1
      %vm424 = vcmp.lt.s32.totalorder %v422, %v423
      %v425 = vsel %vm424, %v422, %v423
      %vm426 = vcmp.eq.s32.totalorder %v406, %v416
      %vm427 = vcmp.eq.s32.totalorder %v407, %v425
      %v428 = vsel %vm426, 1, 0
      %v429 = vsel %vm427, 1, 0
      %v430 = vcvt.s32.f32 %v428
      %v431 = vcvt.s32.f32 %v429
      %v433 = vsel %vm339, %v337, 0
      %435 = vmatpush.msra.mxu0 0.0
      %436 = vmatpush.msra.mxu0 0.0
      %437 = vmatpush.msra.mxu0 0.0
      %438 = vmatpush.msra.mxu0 0.0
      %439 = vmatpush.msra.mxu0 0.0
      %440 = vmatpush.msra.mxu0 0.0
      %441 = vmatpush.msra.mxu0 0.0
      %442 = vmatpush.msra.mxu0 0.0
      %443 = vmatpush.msra.mxu0 0.0
      %444 = vmatpush.msra.mxu0 0.0
      %445 = vmatpush.msra.mxu0 0.0
      %446 = vmatpush.msra.mxu0 0.0
      %447 = vmatpush.msra.mxu0 0.0
      %448 = vmatpush.msra.mxu0 0.0
      %449 = vmatpush.msra.mxu0 0.0
      %450 = vmatpush.msra.mxu0 %v430
      %451 = vmatmul.f32.gmra.mxu0 %v433
      %v452 = vpop.f32.mrf.mxu0
      %v453 = vadd.f32 0.0, %v452
      %454 = vdwg.mxu0
      %455 = vmatpush.msra.mxu0 0.0
      %456 = vmatpush.msra.mxu0 0.0
      %457 = vmatpush.msra.mxu0 0.0
      %458 = vmatpush.msra.mxu0 0.0
      %459 = vmatpush.msra.mxu0 0.0
      %460 = vmatpush.msra.mxu0 0.0
      %461 = vmatpush.msra.mxu0 0.0
      %462 = vmatpush.msra.mxu0 0.0
      %463 = vmatpush.msra.mxu0 0.0
      %464 = vmatpush.msra.mxu0 0.0
      %465 = vmatpush.msra.mxu0 0.0
      %466 = vmatpush.msra.mxu0 0.0
      %467 = vmatpush.msra.mxu0 0.0
      %468 = vmatpush.msra.mxu0 0.0
      %469 = vmatpush.msra.mxu0 0.0
      %470 = vmatpush.msra.mxu0 %v431
      %471 = vmatmul.f32.gmra.mxu0 %v433
      %v472 = vpop.f32.mrf.mxu0
      %v473 = vadd.f32 0.0, %v472
      %474 = vdwg.mxu0
      %v475 = vrot.slane %v425, 7
      %vm476 = vcmask 1040384
      %v477 = vsel %vm476, %v416, %v475
      %v478 = vlaneseq
      %vm479 = vcmp.ge.s32.totalorder %v478, 0
      %vm480 = vcmp.lt.s32.totalorder %v478, 256
      %vm481 = vmand %vm479, %vm480
      %482 = vst.msk [vmem:[%s313] sm:$0x3] %vm481, %v477
      %483 = vst [vmem:[%s323] sm:$0xff] %v453
      %484 = vst [vmem:[%s323 + $0x8] sm:$0xff] %v473
      %v485 = vsub.f32 %v334, %v453
      %v486 = vsub.f32 %v335, %v473
      %v487 = vmul.f32 %v485, %v485
      %v488 = vmul.f32 %v486, %v486
      %v489 = vrot.slane %v487, 4
      %v490 = vadd.f32 %v487, %v489
      %v491 = vrot.slane %v490, 2
      %v492 = vadd.f32 %v490, %v491
      %v493 = vrot.slane %v492, 1
      %v494 = vadd.f32 %v492, %v493
      %v495 = vrot.slane %v488, 4
      %v496 = vadd.f32 %v488, %v495
      %v497 = vrot.slane %v496, 2
      %v498 = vadd.f32 %v496, %v497
      %v499 = vrot.slane %v498, 1
      %v500 = vadd.f32 %v498, %v499
      %v503 = vrot.slane %v500, 7
      %v504 = vsel %vm476, %v494, %v503
      %506 = vst.msk [vmem:[%s332] sm:$0x3] %vm481, %v504
      %s507 = smul.u32 2, %s23
      %p508 = scmp.lt.s32.totalorder %s22, 1
      %s509 = scalar_select %p508, %s22, 1
      %p510 = scmp.lt.s32.totalorder %s507, 1
      %s511 = scalar_select %p510, %s507, 1
      %s512 = smul.addr %s509, 2
      %s513 = sadd.s32 %s511, %s512
      %s514 = scalar_lea.vmem %s4, %s513
      %s515 = smul.u32 2, %s23
      %p516 = scmp.lt.s32.totalorder %s22, 1
      %s517 = scalar_select %p516, %s22, 1
      %p518 = scmp.lt.s32.totalorder %s515, 1
      %s519 = scalar_select %p518, %s515, 1
      %s520 = smul.addr %s517, 2
      %s521 = sadd.s32 %s519, %s520
      %s522 = smul.addr %s521, 8
      %s523 = scalar_lea.vmem %s5, %s522
      %s524 = smul.u32 2, %s23
      %p525 = scmp.lt.s32.totalorder %s22, 1
      %s526 = scalar_select %p525, %s22, 1
      %p527 = scmp.lt.s32.totalorder %s524, 1
      %s528 = scalar_select %p527, %s524, 1
      %s529 = smul.addr %s526, 2
      %s530 = sadd.s32 %s528, %s529
      %s531 = scalar_lea.vmem %s6, %s530
      // Predicated region
      $region37: #{vq_vae_codebook_forward.1} parent=35 // pred_check
        %p532 = pneg %p141
      $region38: #{vq_vae_codebook_forward.1} parent=35 // pred_check_branch
        %534 = sbr.rel (%p532) target = $region40
      $region39: #{vq_vae_codebook_forward.1} parent=35 // pred_region
        %s535 = smul.u32 2, %s23
      $region40: #{vq_vae_codebook_forward.1} parent=35 // pred_fallthru
        _
      // Predicated region
      $region41: #{vq_vae_codebook_forward.1} parent=35 // pred_check
        %p536 = pneg %p169
      $region42: #{vq_vae_codebook_forward.1} parent=35 // pred_check_branch
        %538 = sbr.rel (%p536) target = $region44
      $region43: #{vq_vae_codebook_forward.1} parent=35 // pred_region
        %s539 = smul.u32 2, %s23
      $region44: #{vq_vae_codebook_forward.1} parent=35 // pred_fallthru
        _
      // Predicated region
      $region45: #{vq_vae_codebook_forward.1} parent=35 // pred_check
        %p540 = pneg %p197
      $region46: #{vq_vae_codebook_forward.1} parent=35 // pred_check_branch
        %542 = sbr.rel (%p540) target = $region48
      $region47: #{vq_vae_codebook_forward.1} parent=35 // pred_region
        %s543 = smul.u32 2, %s23
      $region48: #{vq_vae_codebook_forward.1} parent=35 // pred_fallthru
        _
    $region36: #{vq_vae_codebook_forward.1} parent=5 // pred_fallthru
      _
    %p544 = scmp.le.s32.totalorder 2, %s13
    // Predicated region
    $region49: #{vq_vae_codebook_forward.1} parent=5 // pred_check
      %p545 = pneg %p544
    $region50: #{vq_vae_codebook_forward.1} parent=5 // pred_check_branch
      %547 = sbr.rel (%p545) target = $region52
    $region51: #{vq_vae_codebook_forward.1} parent=5 // pred_region
      %s548 = ssub.s32 %s13, 2
      // Predicated region
      $region53: #{vq_vae_codebook_forward.1} parent=51 // pred_check
        %p549 = pneg %p147
      $region54: #{vq_vae_codebook_forward.1} parent=51 // pred_check_branch
        %551 = sbr.rel (%p549) target = $region56
      $region55: #{vq_vae_codebook_forward.1} parent=51 // pred_region
        %s552 = smul.u32 2, %s25
        %p553 = scmp.lt.s32.totalorder %s24, 1
        %s554 = scalar_select %p553, %s24, 1
        %p555 = scmp.lt.s32.totalorder %s552, 1
        %s556 = scalar_select %p555, %s552, 1
        %s557 = smul.addr %s554, 2
        %s558 = sadd.s32 %s556, %s557
        %s559 = scalar_lea.vmem %s4, %s558
      $region56: #{vq_vae_codebook_forward.1} parent=51 // pred_fallthru
        _
      // Predicated region
      $region57: #{vq_vae_codebook_forward.1} parent=51 // pred_check
        %p560 = pneg %p175
      $region58: #{vq_vae_codebook_forward.1} parent=51 // pred_check_branch
        %562 = sbr.rel (%p560) target = $region60
      $region59: #{vq_vae_codebook_forward.1} parent=51 // pred_region
        %s563 = smul.u32 2, %s25
        %p564 = scmp.lt.s32.totalorder %s24, 1
        %s565 = scalar_select %p564, %s24, 1
        %p566 = scmp.lt.s32.totalorder %s563, 1
        %s567 = scalar_select %p566, %s563, 1
        %s568 = smul.addr %s565, 2
        %s569 = sadd.s32 %s567, %s568
        %s570 = smul.addr %s569, 8
        %s571 = scalar_lea.vmem %s5, %s570
      $region60: #{vq_vae_codebook_forward.1} parent=51 // pred_fallthru
        _
      // Predicated region
      $region61: #{vq_vae_codebook_forward.1} parent=51 // pred_check
        %p572 = pneg %p203
      $region62: #{vq_vae_codebook_forward.1} parent=51 // pred_check_branch
        %574 = sbr.rel (%p572) target = $region64
      $region63: #{vq_vae_codebook_forward.1} parent=51 // pred_region
        %s575 = smul.u32 2, %s25
        %p576 = scmp.lt.s32.totalorder %s24, 1
        %s577 = scalar_select %p576, %s24, 1
        %p578 = scmp.lt.s32.totalorder %s575, 1
        %s579 = scalar_select %p578, %s575, 1
        %s580 = smul.addr %s577, 2
        %s581 = sadd.s32 %s579, %s580
        %s582 = scalar_lea.vmem %s6, %s581
      $region64: #{vq_vae_codebook_forward.1} parent=51 // pred_fallthru
        _
    $region52: #{vq_vae_codebook_forward.1} parent=5 // pred_fallthru
      _
  $region6: #{vq_vae_codebook_forward.1} parent=0 // loop_footer
    %s17 = sadd.s32 1, %s13
  $region7: #{vq_vae_codebook_forward.1} parent=0 // loop_footer_branch
    %12 = sbr.rel target = $region3
  $region8: #{vq_vae_codebook_forward.1} parent=0 // loop_exit
    _

</llo_original>
